<compile_context>
chip_gen: v7x
topology: tpu7x:2x2x1
jax: 0.10.0
libtpu: 0.0.40
codegen_flags: <defaults>
</compile_context>

<pallas_src>
import functools

import jax
import jax.numpy as jnp
import numpy as np
from jax import lax
from jax.experimental import pallas as pl
from jax.experimental.pallas import tpu as pltpu


def _aligner_kernel(xp_ref, wcat_ref, convb_ref, gamma_ref, beta_ref,
                    projw_ref, projb_ref,
                    probs_ref, dup_ref, l_scr, lp_scr, *, num_classes):
    # Per-grid-step block shapes (grid = (B // Bt, R // Rt)):
    #   xp_ref   : (Bt, T+2, Din) bf16   zero-padded input (conv padding=1)
    #   wcat_ref : (3*Din, H) bf16       fused conv taps [w0; w1; w2]
    #   convb_ref/gamma_ref/beta_ref : (1, H) f32
    #   projw_ref: (H, Ppad) bf16 ; projb_ref: (1, Ppad) f32   (lane-padded)
    #   probs_ref: (Bt, T, Ppad) f32     written only at r == 0
    #   dup_ref  : (Bt, Rt, Tpad) bf16   rows [r*Rt, (r+1)*Rt) of the dup matrix
    #   l_scr / lp_scr : VMEM (Bt, Tpad) f32   L / L_prev carried across r
    Bt, _, Din = xp_ref.shape
    T = probs_ref.shape[1]
    Ppad = probs_ref.shape[2]
    Rt, Tpad = dup_ref.shape[1], dup_ref.shape[2]
    H = wcat_ref.shape[1]
    r_idx = pl.program_id(1)

    # NOTE: correct because the r axis is innermost + "arbitrary" and the probs
    # block index is constant over r (accumulator-style resident output).
    @pl.when(r_idx == 0)
    def _compute_probs_and_lengths():
        xp = xp_ref[...]                                     # (Bt, T+2, Din) bf16
        if Din >= 128:
            # MXU already full at K=Din: accumulate 3 shifted matmuls and skip
            # the (Bt*T, 3*Din) im2col slab (saves VMEM + ld/st slot pressure).
            h = jnp.zeros((Bt * T, H), jnp.float32)
            for k in range(3):
                xk = xp[:, k:k + T, :].reshape(Bt * T, Din)
                h = h + jnp.dot(xk, wcat_ref[k * Din:(k + 1) * Din, :],
                                preferred_element_type=jnp.float32)
        else:
            # im2col slab [x[t-1] | x[t] | x[t+1]] -> one fused matmul (K=3*Din)
            xcat = jnp.concatenate(
                [xp[:, 0:T, :], xp[:, 1:T + 1, :], xp[:, 2:T + 2, :]],
                axis=-1).reshape(Bt * T, 3 * Din)
            h = jnp.dot(xcat, wcat_ref[...],
                        preferred_element_type=jnp.float32)
        h = h + convb_ref[...]                               # (Bt*T, H) f32

        # ReLU
        h = jnp.maximum(h, 0.0)

        # LayerNorm over H (eps=1e-5, biased variance), f32
        mean = jnp.mean(h, axis=-1, keepdims=True)
        var = jnp.mean((h - mean) * (h - mean), axis=-1, keepdims=True)
        hn = (h - mean) * lax.rsqrt(var + 1e-5)
        hn = hn * gamma_ref[...] + beta_ref[...]

        # Dropout(0.3): identity at inference.

        # Projection H -> Ppad (lane-dense; padded proj columns are zero).
        probs = (jnp.dot(hn.astype(jnp.bfloat16), projw_ref[...],
                         preferred_element_type=jnp.float32)
                 + projb_ref[...])                           # (Bt*T, Ppad) f32
        probs3 = probs.reshape(Bt, T, Ppad)
        probs_ref[...] = probs3

        # argmax over the valid classes (first occurrence), as float index.
        lane = lax.broadcasted_iota(jnp.int32, probs3.shape, 2)
        masked = jnp.where(lane < num_classes, probs3, jnp.float32(-1e30))
        mx = jnp.max(masked, axis=-1, keepdims=True)
        idx = jnp.min(jnp.where(masked == mx, lane.astype(jnp.float32),
                                jnp.float32(Ppad)), axis=-1)  # (Bt, T)
        a = idx + 1.0                                         # argmax + 1

        # Inclusive cumsum on the MXU against an in-kernel triangular mask.
        # Mask is lane-padded to Tpad (cols >= T are zero) so the padded lanes
        # of L come out exactly 0 and the dup rows there are 0.
        row = lax.broadcasted_iota(jnp.int32, (T, Tpad), 0)
        col = lax.broadcasted_iota(jnp.int32, (T, Tpad), 1)
        incl = jnp.logical_and(row <= col, col < T).astype(jnp.bfloat16)
        L = jnp.dot(a.astype(jnp.bfloat16), incl,
                    preferred_element_type=jnp.float32)       # (Bt, Tpad)
        if Tpad > T:
            a_pad = jnp.concatenate(
                [a, jnp.zeros((Bt, Tpad - T), jnp.float32)], axis=-1)
        else:
            a_pad = a
        l_scr[...] = L                                        # L[t]
        lp_scr[...] = L - a_pad                               # L[t-1] (0 at t=0)

    # duplication-matrix tile for global rows [r_idx*Rt, (r_idx+1)*Rt):
    #   dm[r, t] = 1  iff  Lprev[t] <= r < L[t]      (exact 0/1 -> bf16 lossless)
    L = l_scr[...][:, None, :]                                # (Bt, 1, Tpad)
    Lp = lp_scr[...][:, None, :]
    rr = (lax.broadcasted_iota(jnp.int32, (Bt, Rt, Tpad), 1)
          + r_idx * Rt).astype(jnp.float32)                   # global row index
    dm = jnp.logical_and(rr < L, rr >= Lp)
    dup_ref[...] = dm.astype(dup_ref.dtype)


def length_class_duplication_forward(x, params, *, max_duplication=3):
    """x: (B, T, input_dim) float32. Returns (lengths_probs f32, dup matrix bf16)."""
    B, T, Din = x.shape
    conv_w, conv_b = params["conv_w"], params["conv_b"]
    gamma, beta = params["ln_g"], params["ln_b"]
    proj_w, proj_b = params["proj_w"], params["proj_b"]
    H = conv_w.shape[2]
    P = proj_w.shape[1]
    Ppad = pl.cdiv(max(P, 1), 128) * 128       # lane-dense probs output
    Tpad = pl.cdiv(T, 128) * 128               # lane-dense dup output
    R = T * max_duplication

    # Per-generation VMEM budget (v5e/v6e 128 MiB, v7x 64 MiB).
    try:
        vmem_cap = int(pltpu.get_tpu_info().vmem_capacity_bytes)
    except Exception:
        vmem_cap = 64 * 1024 * 1024
    vmem_limit = min(int(0.75 * vmem_cap), 100 * 1024 * 1024)

    # Batch Bt rows per grid step so M = Bt*T feeds the MXU for small shapes.
    bt = 1
    while B % (bt * 2) == 0 and bt * 2 * T <= 512:
        bt *= 2

    # r-axis tiling: collapse (Rt = R) when the bf16 dup tile fits the budget,
    # otherwise Rt = T (requires T % 8 == 0 for sublane alignment).
    dup_tile_bytes = 2 * bt * R * Tpad * 2     # bf16, double-buffered
    if dup_tile_bytes <= vmem_limit // 4 or T % 8 != 0:
        Rt = R
    else:
        Rt = T
    n_r = R // Rt

    # MXU-friendly weights: fused conv taps + lane-padded projection, bf16.
    w_cat = conv_w.reshape(3 * Din, H).astype(jnp.bfloat16)
    projw_p = jnp.zeros((H, Ppad), jnp.bfloat16).at[:, :P].set(
        proj_w.astype(jnp.bfloat16))
    projb_p = jnp.zeros((1, Ppad), jnp.float32).at[:, :P].set(proj_b)

    # Conv halo (padding=1), cast to bf16 in the same pass -> half the DMA.
    # TODO(synk): fold the halo padding into the kernel to save this extra HBM
    # pass over x for very large B*T*Din.
    x_pad = jnp.pad(x, ((0, 0), (1, 1), (0, 0))).astype(jnp.bfloat16)

    kernel = functools.partial(_aligner_kernel, num_classes=P)
    probs_full, dup_full = pl.pallas_call(
        kernel,
        out_shape=(jax.ShapeDtypeStruct((B, T, Ppad), jnp.float32),
                   jax.ShapeDtypeStruct((B, R, Tpad), jnp.bfloat16)),
        grid=(B // bt, n_r),
        in_specs=[
            pl.BlockSpec((bt, T + 2, Din), lambda b, r: (b, 0, 0)),
            # TODO(synk): these constant-index blocks could be single-buffered
            # (pipeline_mode=pl.Buffered(1)) to reclaim VMEM on v7x once that
            # path is verified on the target jax version.
            pl.BlockSpec((3 * Din, H), lambda b, r: (0, 0)),
            pl.BlockSpec((1, H), lambda b, r: (0, 0)),
            pl.BlockSpec((1, H), lambda b, r: (0, 0)),
            pl.BlockSpec((1, H), lambda b, r: (0, 0)),
            pl.BlockSpec((H, Ppad), lambda b, r: (0, 0)),
            pl.BlockSpec((1, Ppad), lambda b, r: (0, 0)),
        ],
        out_specs=(
            pl.BlockSpec((bt, T, Ppad), lambda b, r: (b, 0, 0)),
            pl.BlockSpec((bt, Rt, Tpad), lambda b, r: (b, r, 0)),
        ),
        scratch_shapes=[pltpu.VMEM((bt, Tpad), jnp.float32),
                        pltpu.VMEM((bt, Tpad), jnp.float32)],
        compiler_params=pltpu.CompilerParams(
            dimension_semantics=("parallel", "arbitrary"),
            vmem_limit_bytes=vmem_limit),
    )(x_pad, w_cat, conv_b, gamma, beta, projw_p, projb_p)
    # dup values are exactly 0/1 -> bf16 is lossless; cast in the consumer if
    # f32 is truly required.
    return probs_full[:, :, :P], dup_full[:, :, :T]


def init_params(key, input_dim, hidden_dim, max_duplication=3):
    P = max_duplication * 3
    k1, k2, k3, k4 = jax.random.split(key, 4)
    # conv weight kept as (3, input_dim, hidden_dim): tap k multiplies x[t-1+k]
    conv_w = 0.1 * jax.random.normal(k1, (3, input_dim, hidden_dim), jnp.float32)
    conv_b = 0.1 * jax.random.normal(k2, (1, hidden_dim), jnp.float32)
    ln_g = jnp.ones((1, hidden_dim), jnp.float32)
    ln_b = jnp.zeros((1, hidden_dim), jnp.float32)
    proj_w = 0.1 * jax.random.normal(k3, (hidden_dim, P), jnp.float32)
    proj_b = 0.1 * jax.random.normal(k4, (1, P), jnp.float32)
    return dict(conv_w=conv_w, conv_b=conv_b, ln_g=ln_g, ln_b=ln_b,
                proj_w=proj_w, proj_b=proj_b)


def _duplication_from_probs(probs, max_duplication):
    """Exact duplication matrix from a given probs tensor (pure JAX, f32)."""
    B, T, _ = probs.shape
    lengths = jnp.cumsum(jnp.argmax(probs, axis=-1) + 1, axis=-1)      # (B, T)
    R = T * max_duplication
    rr = jnp.arange(1, R + 1, dtype=jnp.float32)[None, :, None]        # (1, R, 1)
    L = lengths.astype(jnp.float32)[:, None, :]                        # (B, 1, T)
    Lprev = jnp.concatenate(
        [jnp.zeros((B, 1, 1), jnp.float32), L[:, :, :-1]], axis=-1)
    return jnp.clip(L - rr + 1.0, 0.0, 1.0) * jnp.clip(rr - Lprev, 0.0, 1.0)


def _reference_forward(x, params, max_duplication=3):
    """Pure-JAX reference mirroring the forward (inference, bf16 matmuls)."""
    B, T, Din = x.shape
    xp = jnp.pad(x, ((0, 0), (1, 1), (0, 0))).astype(jnp.bfloat16)
    xcat = jnp.concatenate([xp[:, 0:T], xp[:, 1:T + 1], xp[:, 2:T + 2]], axis=-1)
    w_cat = params["conv_w"].reshape(3 * Din, -1).astype(jnp.bfloat16)
    h = (jnp.einsum("btk,kh->bth", xcat, w_cat,
                    preferred_element_type=jnp.float32) + params["conv_b"])
    h = jnp.maximum(h, 0.0)
    mean = jnp.mean(h, axis=-1, keepdims=True)
    var = jnp.mean((h - mean) ** 2, axis=-1, keepdims=True)
    hn = (h - mean) * lax.rsqrt(var + 1e-5) * params["ln_g"] + params["ln_b"]
    probs = (jnp.einsum("bth,hp->btp", hn.astype(jnp.bfloat16),
                        params["proj_w"].astype(jnp.bfloat16),
                        preferred_element_type=jnp.float32)
             + params["proj_b"])
    return probs, _duplication_from_probs(probs, max_duplication)


if __name__ == "__main__":
    B, T, Din, H, MD = 2, 8, 16, 32, 3
    key = jax.random.PRNGKey(0)
    kx, kp = jax.random.split(key)
    x = jax.random.normal(kx, (B, T, Din), jnp.float32)
    params = init_params(kp, Din, H, MD)

    fwd = jax.jit(functools.partial(length_class_duplication_forward,
                                    max_duplication=MD))
    probs, dup = fwd(x, params)
    jax.block_until_ready((probs, dup))

    # probs vs a bf16-matmul pure-JAX reference (tolerance covers MXU-vs-XLA
    # accumulation-order differences).
    ref_probs, _ = _reference_forward(x, params, MD)
    np.testing.assert_allclose(np.asarray(probs), np.asarray(ref_probs),
                               rtol=1e-2, atol=1e-2)
    # duplication matrix must be the exact function of the kernel's own probs
    # (avoids flakiness from argmax near-ties between the two matmul paths).
    dup_f32 = np.asarray(dup.astype(jnp.float32))
    dup_check = np.asarray(_duplication_from_probs(probs, MD))
    np.testing.assert_allclose(dup_f32, dup_check, rtol=0, atol=1e-5)

    assert probs.shape == (B, T, MD * 3)
    assert dup.shape == (B, T * MD, T)
    print("KERNEL_OK")
</pallas_src>

<mosaic_0001>
module attributes {stable_mosaic.version = 11 : i64} {
  func.func @_aligner_kernel(%arg0: i32, %arg1: i32, %arg2: memref<2x10x16xbf16, #tpu.memory_space<vmem>>, %arg3: memref<48x32xbf16, #tpu.memory_space<vmem>>, %arg4: memref<1x32xf32, #tpu.memory_space<vmem>>, %arg5: memref<1x32xf32, #tpu.memory_space<vmem>>, %arg6: memref<1x32xf32, #tpu.memory_space<vmem>>, %arg7: memref<32x128xbf16, #tpu.memory_space<vmem>>, %arg8: memref<1x128xf32, #tpu.memory_space<vmem>>, %arg9: memref<2x8x128xf32, #tpu.memory_space<vmem>>, %arg10: memref<2x24x128xbf16, #tpu.memory_space<vmem>>, %arg11: memref<2x128xf32, #tpu.memory_space<vmem>>, %arg12: memref<2x128xf32, #tpu.memory_space<vmem>>) attributes {dimension_semantics = [#tpu.dimension_semantics<parallel>, #tpu.dimension_semantics<arbitrary>], iteration_bounds = array<i64: 1, 1>, scalar_prefetch = 0 : i64, scratch_operands = 2 : i64, tpu.core_type = #tpu.core_type<tc>, window_params = [{transform_indices = @transform_0, window_bounds = array<i64: 2, 10, 16>}, {pipeline_mode = #tpu.pipeline_mode<synchronous>, transform_indices = @transform_1, window_bounds = array<i64: 48, 32>}, {pipeline_mode = #tpu.pipeline_mode<synchronous>, transform_indices = @transform_2, window_bounds = array<i64: 1, 32>}, {pipeline_mode = #tpu.pipeline_mode<synchronous>, transform_indices = @transform_3, window_bounds = array<i64: 1, 32>}, {pipeline_mode = #tpu.pipeline_mode<synchronous>, transform_indices = @transform_4, window_bounds = array<i64: 1, 32>}, {pipeline_mode = #tpu.pipeline_mode<synchronous>, transform_indices = @transform_5, window_bounds = array<i64: 32, 128>}, {pipeline_mode = #tpu.pipeline_mode<synchronous>, transform_indices = @transform_6, window_bounds = array<i64: 1, 128>}, {transform_indices = @transform_7, window_bounds = array<i64: 2, 8, 128>}, {transform_indices = @transform_8, window_bounds = array<i64: 2, 24, 128>}]} {
    %c0_i32 = arith.constant 0 : i32
    %0 = arith.cmpi eq, %arg1, %c0_i32 : i32
    %1 = arith.extui %0 : i1 to i32
    %c0_i32_0 = arith.constant 0 : i32
    %2 = arith.cmpi ne, %1, %c0_i32_0 : i32
    scf.if %2 {
      %c0_7 = arith.constant 0 : index
      %c0_8 = arith.constant 0 : index
      %c0_9 = arith.constant 0 : index
      %21 = vector.load %arg2[%c0_7, %c0_8, %c0_9] : memref<2x10x16xbf16, #tpu.memory_space<vmem>>, vector<2x10x16xbf16>
      %22 = vector.extract_strided_slice %21 {offsets = [0, 0, 0], sizes = [2, 8, 16], strides = [1, 1, 1]} : vector<2x10x16xbf16> to vector<2x8x16xbf16>
      %23 = vector.extract_strided_slice %21 {offsets = [0, 1, 0], sizes = [2, 8, 16], strides = [1, 1, 1]} : vector<2x10x16xbf16> to vector<2x8x16xbf16>
      %24 = vector.extract_strided_slice %21 {offsets = [0, 2, 0], sizes = [2, 8, 16], strides = [1, 1, 1]} : vector<2x10x16xbf16> to vector<2x8x16xbf16>
      %25 = tpu.concatenate %22, %23, %24 in 2 : vector<2x8x16xbf16>, vector<2x8x16xbf16>, vector<2x8x16xbf16> -> vector<2x8x48xbf16>
      %26 = vector.shape_cast %25 : vector<2x8x48xbf16> to vector<16x48xbf16>
      %c0_10 = arith.constant 0 : index
      %c0_11 = arith.constant 0 : index
      %27 = vector.load %arg3[%c0_10, %c0_11] : memref<48x32xbf16, #tpu.memory_space<vmem>>, vector<48x32xbf16>
      %cst = arith.constant dense<0.000000e+00> : vector<16x32xf32>
      %28 = tpu.matmul %26, %27, %cst {dimension_numbers = #tpu.dot_dimension_numbers<[1], [0], [0], [1], [0, 0, 1, 1], [], []>} : vector<16x48xbf16>, vector<48x32xbf16>, vector<16x32xf32> -> vector<16x32xf32>
      %c0_12 = arith.constant 0 : index
      %c0_13 = arith.constant 0 : index
      %29 = vector.load %arg4[%c0_12, %c0_13] : memref<1x32xf32, #tpu.memory_space<vmem>>, vector<1x32xf32>
      %30 = vector.broadcast %29 : vector<1x32xf32> to vector<16x32xf32>
      %31 = arith.addf %28, %30 : vector<16x32xf32>
      %cst_14 = arith.constant 0.000000e+00 : f32
      %32 = vector.broadcast %cst_14 : f32 to vector<16x32xf32>
      %33 = arith.maximumf %31, %32 : vector<16x32xf32>
      %cst_15 = arith.constant dense<0.000000e+00> : vector<16xf32>
      %34 = vector.multi_reduction <add>, %33, %cst_15 [1] : vector<16x32xf32> to vector<16xf32>
      %35 = vector.shape_cast %34 : vector<16xf32> to vector<16x1xf32>
      %cst_16 = arith.constant 3.200000e+01 : f32
      %36 = vector.broadcast %cst_16 : f32 to vector<16x1xf32>
      %37 = arith.divf %35, %36 : vector<16x1xf32>
      %38 = vector.broadcast %37 : vector<16x1xf32> to vector<16x32xf32>
      %39 = arith.subf %33, %38 : vector<16x32xf32>
      %40 = vector.broadcast %37 : vector<16x1xf32> to vector<16x32xf32>
      %41 = arith.subf %33, %40 : vector<16x32xf32>
      %42 = arith.mulf %39, %41 : vector<16x32xf32>
      %cst_17 = arith.constant dense<0.000000e+00> : vector<16xf32>
      %43 = vector.multi_reduction <add>, %42, %cst_17 [1] : vector<16x32xf32> to vector<16xf32>
      %44 = vector.shape_cast %43 : vector<16xf32> to vector<16x1xf32>
      %cst_18 = arith.constant 3.200000e+01 : f32
      %45 = vector.broadcast %cst_18 : f32 to vector<16x1xf32>
      %46 = arith.divf %44, %45 : vector<16x1xf32>
      %47 = vector.broadcast %37 : vector<16x1xf32> to vector<16x32xf32>
      %48 = arith.subf %33, %47 : vector<16x32xf32>
      %cst_19 = arith.constant 9.99999974E-6 : f32
      %49 = vector.broadcast %cst_19 : f32 to vector<16x1xf32>
      %50 = arith.addf %46, %49 : vector<16x1xf32>
      %51 = math.rsqrt %50 : vector<16x1xf32>
      %52 = vector.broadcast %51 : vector<16x1xf32> to vector<16x32xf32>
      %53 = arith.mulf %48, %52 : vector<16x32xf32>
      %c0_20 = arith.constant 0 : index
      %c0_21 = arith.constant 0 : index
      %54 = vector.load %arg5[%c0_20, %c0_21] : memref<1x32xf32, #tpu.memory_space<vmem>>, vector<1x32xf32>
      %55 = vector.broadcast %54 : vector<1x32xf32> to vector<16x32xf32>
      %56 = arith.mulf %53, %55 : vector<16x32xf32>
      %c0_22 = arith.constant 0 : index
      %c0_23 = arith.constant 0 : index
      %57 = vector.load %arg6[%c0_22, %c0_23] : memref<1x32xf32, #tpu.memory_space<vmem>>, vector<1x32xf32>
      %58 = vector.broadcast %57 : vector<1x32xf32> to vector<16x32xf32>
      %59 = arith.addf %56, %58 : vector<16x32xf32>
      %60 = arith.truncf %59 : vector<16x32xf32> to vector<16x32xbf16>
      %c0_24 = arith.constant 0 : index
      %c0_25 = arith.constant 0 : index
      %61 = vector.load %arg7[%c0_24, %c0_25] : memref<32x128xbf16, #tpu.memory_space<vmem>>, vector<32x128xbf16>
      %cst_26 = arith.constant dense<0.000000e+00> : vector<16x128xf32>
      %62 = tpu.matmul %60, %61, %cst_26 {dimension_numbers = #tpu.dot_dimension_numbers<[1], [0], [0], [1], [0, 0, 1, 1], [], []>} : vector<16x32xbf16>, vector<32x128xbf16>, vector<16x128xf32> -> vector<16x128xf32>
      %c0_27 = arith.constant 0 : index
      %c0_28 = arith.constant 0 : index
      %63 = vector.load %arg8[%c0_27, %c0_28] : memref<1x128xf32, #tpu.memory_space<vmem>>, vector<1x128xf32>
      %64 = vector.broadcast %63 : vector<1x128xf32> to vector<16x128xf32>
      %65 = arith.addf %62, %64 : vector<16x128xf32>
      %66 = vector.shape_cast %65 : vector<16x128xf32> to vector<2x8x128xf32>
      %c0_29 = arith.constant 0 : index
      %c0_30 = arith.constant 0 : index
      %c0_31 = arith.constant 0 : index
      %67 = vector.load %arg9[%c0_29, %c0_30, %c0_31] : memref<2x8x128xf32, #tpu.memory_space<vmem>>, vector<2x8x128xf32>
      tpu.vector_store %arg9[%c0_29, %c0_30, %c0_31], %66 {strides = array<i32>} : memref<2x8x128xf32, #tpu.memory_space<vmem>>, vector<2x8x128xf32>,
      %68 = tpu.iota {dimensions = array<i32: 2>} : vector<2x8x128xi32>
      %c9_i32 = arith.constant 9 : i32
      %69 = vector.broadcast %c9_i32 : i32 to vector<2x8x128xi32>
      %70 = arith.cmpi slt, %68, %69 : vector<2x8x128xi32>
      %cst_32 = arith.constant -1.000000e+30 : f32
      %71 = vector.broadcast %cst_32 : f32 to vector<2x8x128xf32>
      %72 = arith.select %70, %66, %71 : vector<2x8x128xi1>, vector<2x8x128xf32>
      %cst_33 = arith.constant dense<0xFF800000> : vector<2x8xf32>
      %73 = vector.multi_reduction <maximumf>, %72, %cst_33 [2] : vector<2x8x128xf32> to vector<2x8xf32>
      %74 = vector.shape_cast %73 : vector<2x8xf32> to vector<2x8x1xf32>
      %75 = vector.broadcast %74 : vector<2x8x1xf32> to vector<2x8x128xf32>
      %76 = arith.cmpf oeq, %72, %75 : vector<2x8x128xf32>
      %77 = arith.sitofp %68 : vector<2x8x128xi32> to vector<2x8x128xf32>
      %cst_34 = arith.constant 1.280000e+02 : f32
      %78 = vector.broadcast %cst_34 : f32 to vector<2x8x128xf32>
      %79 = arith.select %76, %77, %78 : vector<2x8x128xi1>, vector<2x8x128xf32>
      %cst_35 = arith.constant dense<0x7F800000> : vector<2x8xf32>
      %80 = vector.multi_reduction <minimumf>, %79, %cst_35 [2] : vector<2x8x128xf32> to vector<2x8xf32>
      %cst_36 = arith.constant 1.000000e+00 : f32
      %81 = vector.broadcast %cst_36 : f32 to vector<2x8xf32>
      %82 = arith.addf %80, %81 : vector<2x8xf32>
      %83 = tpu.iota {dimensions = array<i32: 0>} : vector<8x128xi32>
      %84 = tpu.iota {dimensions = array<i32: 1>} : vector<8x128xi32>
      %85 = arith.cmpi sle, %83, %84 : vector<8x128xi32>
      %c8_i32 = arith.constant 8 : i32
      %86 = vector.broadcast %c8_i32 : i32 to vector<8x128xi32>
      %87 = arith.cmpi slt, %84, %86 : vector<8x128xi32>
      %88 = arith.andi %85, %87 : vector<8x128xi1>
      %89 = arith.extui %88 : vector<8x128xi1> to vector<8x128xi32>
      %90 = arith.sitofp %89 : vector<8x128xi32> to vector<8x128xf32>
      %91 = arith.truncf %90 : vector<8x128xf32> to vector<8x128xbf16>
      %92 = arith.truncf %82 : vector<2x8xf32> to vector<2x8xbf16>
      %cst_37 = arith.constant dense<0.000000e+00> : vector<2x128xf32>
      %93 = tpu.matmul %92, %91, %cst_37 {dimension_numbers = #tpu.dot_dimension_numbers<[1], [0], [0], [1], [0, 0, 1, 1], [], []>} : vector<2x8xbf16>, vector<8x128xbf16>, vector<2x128xf32> -> vector<2x128xf32>
      %cst_38 = arith.constant 0.000000e+00 : f32
      %94 = vector.broadcast %cst_38 : f32 to vector<2x120xf32>
      %95 = tpu.concatenate %82, %94 in 1 : vector<2x8xf32>, vector<2x120xf32> -> vector<2x128xf32>
      %c0_39 = arith.constant 0 : index
      %c0_40 = arith.constant 0 : index
      %96 = vector.load %arg11[%c0_39, %c0_40] : memref<2x128xf32, #tpu.memory_space<vmem>>, vector<2x128xf32>
      tpu.vector_store %arg11[%c0_39, %c0_40], %93 {strides = array<i32>} : memref<2x128xf32, #tpu.memory_space<vmem>>, vector<2x128xf32>,
      %97 = arith.subf %93, %95 : vector<2x128xf32>
      %c0_41 = arith.constant 0 : index
      %c0_42 = arith.constant 0 : index
      %98 = vector.load %arg12[%c0_41, %c0_42] : memref<2x128xf32, #tpu.memory_space<vmem>>, vector<2x128xf32>
      tpu.vector_store %arg12[%c0_41, %c0_42], %97 {strides = array<i32>} : memref<2x128xf32, #tpu.memory_space<vmem>>, vector<2x128xf32>,
    } else {
    }
    %c0 = arith.constant 0 : index
    %c0_1 = arith.constant 0 : index
    %3 = vector.load %arg11[%c0, %c0_1] : memref<2x128xf32, #tpu.memory_space<vmem>>, vector<2x128xf32>
    %4 = vector.shape_cast %3 : vector<2x128xf32> to vector<2x1x128xf32>
    %c0_2 = arith.constant 0 : index
    %c0_3 = arith.constant 0 : index
    %5 = vector.load %arg12[%c0_2, %c0_3] : memref<2x128xf32, #tpu.memory_space<vmem>>, vector<2x128xf32>
    %6 = vector.shape_cast %5 : vector<2x128xf32> to vector<2x1x128xf32>
    %7 = tpu.iota {dimensions = array<i32: 1>} : vector<2x24x128xi32>
    %c24_i32 = arith.constant 24 : i32
    %8 = arith.muli %arg1, %c24_i32 : i32
    %9 = vector.broadcast %8 : i32 to vector<2x24x128xi32>
    %10 = arith.addi %7, %9 : vector<2x24x128xi32>
    %11 = arith.sitofp %10 : vector<2x24x128xi32> to vector<2x24x128xf32>
    %12 = vector.broadcast %4 : vector<2x1x128xf32> to vector<2x24x128xf32>
    %13 = arith.cmpf olt, %11, %12 : vector<2x24x128xf32>
    %14 = vector.broadcast %6 : vector<2x1x128xf32> to vector<2x24x128xf32>
    %15 = arith.cmpf oge, %11, %14 : vector<2x24x128xf32>
    %16 = arith.andi %13, %15 : vector<2x24x128xi1>
    %17 = arith.extui %16 : vector<2x24x128xi1> to vector<2x24x128xi32>
    %18 = arith.sitofp %17 : vector<2x24x128xi32> to vector<2x24x128xf32>
    %19 = arith.truncf %18 : vector<2x24x128xf32> to vector<2x24x128xbf16>
    %c0_4 = arith.constant 0 : index
    %c0_5 = arith.constant 0 : index
    %c0_6 = arith.constant 0 : index
    %20 = vector.load %arg10[%c0_4, %c0_5, %c0_6] : memref<2x24x128xbf16, #tpu.memory_space<vmem>>, vector<2x24x128xbf16>
    tpu.vector_store %arg10[%c0_4, %c0_5, %c0_6], %19 {strides = array<i32>} : memref<2x24x128xbf16, #tpu.memory_space<vmem>>, vector<2x24x128xbf16>,
    return
  }
  func.func @transform_0(%arg0: i32, %arg1: i32) -> (i32, i32, i32) {
    %c0_i32 = arith.constant 0 : i32
    %c0_i32_0 = arith.constant 0 : i32
    %c0_i32_1 = arith.constant 0 : i32
    return %arg0, %c0_i32, %c0_i32_0 : i32, i32, i32
  }
  func.func @transform_1(%arg0: i32, %arg1: i32) -> (i32, i32) {
    %c0_i32 = arith.constant 0 : i32
    %c0_i32_0 = arith.constant 0 : i32
    %c0_i32_1 = arith.constant 0 : i32
    return %c0_i32, %c0_i32_0 : i32, i32
  }
  func.func @transform_2(%arg0: i32, %arg1: i32) -> (i32, i32) {
    %c0_i32 = arith.constant 0 : i32
    %c0_i32_0 = arith.constant 0 : i32
    %c0_i32_1 = arith.constant 0 : i32
    return %c0_i32, %c0_i32_0 : i32, i32
  }
  func.func @transform_3(%arg0: i32, %arg1: i32) -> (i32, i32) {
    %c0_i32 = arith.constant 0 : i32
    %c0_i32_0 = arith.constant 0 : i32
    %c0_i32_1 = arith.constant 0 : i32
    return %c0_i32, %c0_i32_0 : i32, i32
  }
  func.func @transform_4(%arg0: i32, %arg1: i32) -> (i32, i32) {
    %c0_i32 = arith.constant 0 : i32
    %c0_i32_0 = arith.constant 0 : i32
    %c0_i32_1 = arith.constant 0 : i32
    return %c0_i32, %c0_i32_0 : i32, i32
  }
  func.func @transform_5(%arg0: i32, %arg1: i32) -> (i32, i32) {
    %c0_i32 = arith.constant 0 : i32
    %c0_i32_0 = arith.constant 0 : i32
    %c0_i32_1 = arith.constant 0 : i32
    return %c0_i32, %c0_i32_0 : i32, i32
  }
  func.func @transform_6(%arg0: i32, %arg1: i32) -> (i32, i32) {
    %c0_i32 = arith.constant 0 : i32
    %c0_i32_0 = arith.constant 0 : i32
    %c0_i32_1 = arith.constant 0 : i32
    return %c0_i32, %c0_i32_0 : i32, i32
  }
  func.func @transform_7(%arg0: i32, %arg1: i32) -> (i32, i32, i32) {
    %c0_i32 = arith.constant 0 : i32
    %c0_i32_0 = arith.constant 0 : i32
    %c0_i32_1 = arith.constant 0 : i32
    return %arg0, %c0_i32, %c0_i32_0 : i32, i32, i32
  }
  func.func @transform_8(%arg0: i32, %arg1: i32) -> (i32, i32, i32) {
    %c0_i32 = arith.constant 0 : i32
    %c0_i32_0 = arith.constant 0 : i32
    return %arg0, %arg1, %c0_i32 : i32, i32, i32
  }
}

</mosaic_0001>

<llo_original>
// kernel: length_class_duplication_forward.1
$region0: #{length_class_duplication_forward.1}
  #allocation0 [shape = 'u32[]', space=smem, size = 0x4, offset = 0x4, fixed_abs, tag = 'smem constant byte address 0x4 - core index']
  #allocation1 [shape = 'u32[144,128]{1,0:T(1,128)}', space=vmem, size = 0x12000, scoped, tag = 'internal scratch']
  #allocation2 [shape = 'f32[2,128]{1,0:T(2,128)}', space=vmem, size = 0x400, scoped, tag = 'scratch operand']
  #allocation3 [shape = 'f32[2,128]{1,0:T(2,128)}', space=vmem, size = 0x400, scoped, tag = 'scratch operand']
  %s0 = inlined_call_operand.vmem [shape: bf16[2,10,16], index: 0, kind: input, shape index: {}]
  %s1 = inlined_call_operand.vmem [shape: bf16[48,32], index: 1, kind: input, shape index: {}]
  %s2 = inlined_call_operand.vmem [shape: f32[1,32], index: 2, kind: input, shape index: {}]
  %s3 = inlined_call_operand.vmem [shape: f32[1,32], index: 3, kind: input, shape index: {}]
  %s4 = inlined_call_operand.vmem [shape: f32[1,32], index: 4, kind: input, shape index: {}]
  %s5 = inlined_call_operand.vmem [shape: bf16[32,128], index: 5, kind: input, shape index: {}]
  %s6 = inlined_call_operand.vmem [shape: f32[1,128], index: 6, kind: input, shape index: {}]
  %s7 = inlined_call_operand.hbm [shape: f32[2,8,128], index: 7, kind: output, shape index: {0}]
  %s8 = inlined_call_operand.vmem [shape: bf16[2,24,128], index: 8, kind: output, shape index: {1}]
  %9 = xla_tuple %s7, %s8
  %s10 = sld [smem:[#allocation0]]
  $region50: #{length_class_duplication_forward.1} parent=0
    _
  %s12 = ssub.s32 1, %s10
  %s13 = scalar_select 0, %s12, %s10
  $region1: #{length_class_duplication_forward.1} parent=0
    #allocation4 [shape = 'u8[8192]{0}', space=vmem, size = 0x2000, scoped, tag = 'output window, operand 0, single buffered']
    #allocation5 [shape = 's32[1]{0}', space=sflag, size = 0x4, scoped, tag = 'scoped memory for length_class_duplication_forward.1']
    %14 = vsyncpa [#allocation5], 0
    // Predicated region
    $region2: #{length_class_duplication_forward.1} parent=1 // pred_check
      _
    $region3: #{length_class_duplication_forward.1} parent=1 // pred_check_branch
      %16 = sbr.rel (0) target = $region5
    $region4: #{length_class_duplication_forward.1} parent=1 // pred_region
      _
    $region5: #{length_class_duplication_forward.1} parent=1 // pred_fallthru
      _
    // Predicated region
    $region6: #{length_class_duplication_forward.1} parent=1 // pred_check
      _
    $region7: #{length_class_duplication_forward.1} parent=1 // pred_check_branch
      %18 = sbr.rel (0) target = $region9
    $region8: #{length_class_duplication_forward.1} parent=1 // pred_region
      _
    $region9: #{length_class_duplication_forward.1} parent=1 // pred_fallthru
      _
    // Predicated region
    $region10: #{length_class_duplication_forward.1} parent=1 // pred_check
      _
    $region11: #{length_class_duplication_forward.1} parent=1 // pred_check_branch
      %20 = sbr.rel (0) target = $region13
    $region12: #{length_class_duplication_forward.1} parent=1 // pred_region
      _
    $region13: #{length_class_duplication_forward.1} parent=1 // pred_fallthru
      _
    // Predicated region
    $region14: #{length_class_duplication_forward.1} parent=1 // pred_check
      _
    $region15: #{length_class_duplication_forward.1} parent=1 // pred_check_branch
      %22 = sbr.rel (0) target = $region17
    $region16: #{length_class_duplication_forward.1} parent=1 // pred_region
      _
    $region17: #{length_class_duplication_forward.1} parent=1 // pred_fallthru
      _
    // Predicated region
    $region18: #{length_class_duplication_forward.1} parent=1 // pred_check
      _
    $region19: #{length_class_duplication_forward.1} parent=1 // pred_check_branch
      %24 = sbr.rel (0) target = $region21
    $region20: #{length_class_duplication_forward.1} parent=1 // pred_region
      _
    $region21: #{length_class_duplication_forward.1} parent=1 // pred_fallthru
      _
    // Predicated region
    $region22: #{length_class_duplication_forward.1} parent=1 // pred_check
      _
    $region23: #{length_class_duplication_forward.1} parent=1 // pred_check_branch
      %26 = sbr.rel (0) target = $region25
    $region24: #{length_class_duplication_forward.1} parent=1 // pred_region
      _
    $region25: #{length_class_duplication_forward.1} parent=1 // pred_fallthru
      _
    // Predicated region
    $region26: #{length_class_duplication_forward.1} parent=1 // pred_check
      _
    $region27: #{length_class_duplication_forward.1} parent=1 // pred_check_branch
      %28 = sbr.rel (0) target = $region29
    $region28: #{length_class_duplication_forward.1} parent=1 // pred_region
      _
    $region29: #{length_class_duplication_forward.1} parent=1 // pred_fallthru
      _
    %p30 = scmp.eq.s32.totalorder 0, 0
    // Predicated region
    $region30: #{length_class_duplication_forward.1} parent=1 // pred_check
      %p31 = pneg %p30
    $region31: #{length_class_duplication_forward.1} parent=1 // pred_check_branch
      %33 = sbr.rel (%p31) target = $region33
    $region32: #{length_class_duplication_forward.1} parent=1 // pred_region
      %v34 = vld [vmem:[%s0] sm:$0xf]
      %v35 = vld [vmem:[%s0 + $0x4] sm:$0x1]
      %v36 = vld [vmem:[%s0 + $0x8] sm:$0xf]
      %v37 = vld [vmem:[%s0 + $0xc] sm:$0x1]
      %v42 = vunpack.c.l.b16 %v34
      %v43 = vunpack.c.l.b16 %v35
      %v44 = vunpack.c.l.b16 %v36
      %v45 = vunpack.c.l.b16 %v37
      %v46 = vpack.c.b16 %v43, %v42
      %v47 = vpack.c.b16 %v45, %v44
      %v49 = vshrl.u32 %v46, 16
      %v51 = vshll.u32 %v46, 16
      %v53 = vrot.slane %v51, 1
      %v54 = vor.u32 %v49, %v53
      %v56 = vshrl.u32 %v47, 16
      %v58 = vshll.u32 %v47, 16
      %v60 = vrot.slane %v58, 1
      %v61 = vor.u32 %v56, %v60
      %62 = vrot.lane.b32.xlu0 %v54, 16
      %v63 = vpop.permute.xlu0 %62
      %64 = vrot.lane.b32.xlu0 %v61, 16
      %v65 = vpop.permute.xlu0 %64
      %v66 = vrot.slane %v46, 1
      %v67 = vrot.slane %v47, 1
      %68 = vrot.lane.b32.xlu0 %v66, 32
      %v69 = vpop.permute.xlu0 %68
      %70 = vrot.lane.b32.xlu0 %v67, 32
      %v71 = vpop.permute.xlu0 %70
      %vm72 = vcmask 130048
      %v75 = vsel %vm72, %v34, %v63
      %v78 = vsel %vm72, %v36, %v65
      %vm79 = vcmask 261120
      %v81 = vsel %vm79, %v75, %v69
      %v83 = vsel %vm79, %v78, %v71
      %v84 = vld [vmem:[%s1] sm:$0xf]
      %v85 = vld [vmem:[%s1 + $0x4] sm:$0xf]
      %v86 = vld [vmem:[%s1 + $0x8] sm:$0xf]
      %v87 = vld [vmem:[%s1 + $0xc] sm:$0xf]
      %v88 = vld [vmem:[%s1 + $0x10] sm:$0xf]
      %v89 = vld [vmem:[%s1 + $0x14] sm:$0xf]
      %v90 = vld [vmem:[%s2] sm:$0x1]
      %v92 = vlaneseq
      %v93 = vshrl.u32 %v92, 7
      %v94 = vsub.s32 0, %v93
      %v95 = vrot.slane %v90, %v94
      %v99 = vunpack.c.l.b16 %v81
      %v100 = vunpack.c.l.b16 %v83
      %v101 = vpack.c.b16 %v100, %v99
      %v108 = vunpack.c.l.b16 %v84
      %v109 = vunpack.c.l.b16 %v85
      %v110 = vunpack.c.l.b16 %v86
      %v111 = vunpack.c.l.b16 %v87
      %v112 = vunpack.c.l.b16 %v88
      %v113 = vunpack.c.l.b16 %v89
      %v114 = vpack.c.b16 %v109, %v108
      %v115 = vpack.c.b16 %v111, %v110
      %v116 = vpack.c.b16 %v113, %v112
      %vm120 = vcmask 392192
      %v122 = vsel %vm120, %v101, 0
      %124 = vmatprep.subr.bf16.mxu0 0
      %125 = vmatpush1.bf16.msra.mxu0 %v114
      %126 = vmatprep.subr.bf16.mxu0 0
      %127 = vmatpush1.bf16.msra.mxu0 %v115
      %128 = vmatprep.subr.bf16.mxu0 0
      %129 = vmatpush1.bf16.msra.mxu0 %v116
      %130 = vmatprep.subr.bf16.mxu0 0
      %131 = vmatpush1.bf16.msra.mxu0 0
      %132 = vmatprep.subr.bf16.mxu0 0
      %133 = vmatpush1.bf16.msra.mxu0 0
      %134 = vmatprep.subr.bf16.mxu0 0
      %135 = vmatpush1.bf16.msra.mxu0 0
      %136 = vmatprep.subr.bf16.mxu0 0
      %137 = vmatpush1.bf16.msra.mxu0 0
      %138 = vmatprep.subr.bf16.mxu0 0
      %139 = vmatpush1.bf16.msra.mxu0 0
      %140 = vmatprep.subr.bf16.mxu0 0
      %141 = vmatpush1.bf16.msra.mxu0 0
      %142 = vmatprep.subr.bf16.mxu0 0
      %143 = vmatpush1.bf16.msra.mxu0 0
      %144 = vmatprep.subr.bf16.mxu0 0
      %145 = vmatpush1.bf16.msra.mxu0 0
      %146 = vmatprep.subr.bf16.mxu0 0
      %147 = vmatpush1.bf16.msra.mxu0 0
      %148 = vmatprep.subr.bf16.mxu0 0
      %149 = vmatpush1.bf16.msra.mxu0 0
      %150 = vmatprep.subr.bf16.mxu0 0
      %151 = vmatpush1.bf16.msra.mxu0 0
      %152 = vmatprep.subr.bf16.mxu0 0
      %153 = vmatpush1.bf16.msra.mxu0 0
      %154 = vmatprep.subr.bf16.mxu0 0
      %155 = vmatpush1.bf16.msra.mxu0 0
      %156 = vmatprep.mubr.bf16.mxu0 0
      %157 = vmatmul.mubr.bf16.gmra.mrb[0].mxu0 %v122
      %v158 = vpop.f32.mrb[0].mxu0
      %v159 = vadd.f32 %v95, %v158
      %v160 = vpop.f32.mrb[0].mxu0
      %v161 = vpop.f32.mrb[0].mxu0
      %v162 = vadd.f32 %v95, %v161
      %v163 = vpop.f32.mrb[0].mxu0
      %164 = vdwg.mxu0
      %v165 = vmax.f32 %v159, 0.0
      %v166 = vmax.f32 %v162, 0.0
      %v167 = vsel %vm79, %v165, 0.0
      %168 = vadd.xlane.f32.xlu0 %v167
      %v169 = vpop.xlane.xlu0 %168
      %v170 = vsel %vm79, %v166, 0.0
      %171 = vadd.xlane.f32.xlu0 %v170
      %v172 = vpop.xlane.xlu0 %171
      %v173 = vrcp.pop 32.0
      %v174 = vmul.f32 %v169, %v173
      %v175 = vmul.f32 %v172, %v173
      %v176 = vsub.f32 %v165, %v174
      %v177 = vsub.f32 %v166, %v175
      %v178 = vmul.f32 %v176, %v176
      %v179 = vmul.f32 %v177, %v177
      %v180 = vsel %vm79, %v178, 0.0
      %181 = vadd.xlane.f32.xlu0 %v180
      %v182 = vpop.xlane.xlu0 %181
      %v183 = vsel %vm79, %v179, 0.0
      %184 = vadd.xlane.f32.xlu0 %v183
      %v185 = vpop.xlane.xlu0 %184
      %v186 = vmul.f32 %v182, %v173
      %v187 = vmul.f32 %v185, %v173
      %v188 = vadd.f32 %v186, 1e-05
      %v189 = vadd.f32 %v187, 1e-05
      %v190 = vrsqrt.pop %v188
      %v191 = vrsqrt.pop %v189
      %v192 = vmul.f32 %v176, %v190
      %v193 = vmul.f32 %v177, %v191
      %v194 = vld [vmem:[%s3] sm:$0x1]
      %v196 = vlaneseq
      %v197 = vshrl.u32 %v196, 7
      %v198 = vsub.s32 0, %v197
      %v199 = vrot.slane %v194, %v198
      %v201 = vmul.f32 %v192, %v199
      %v202 = vmul.f32 %v193, %v199
      %v203 = vld [vmem:[%s4] sm:$0x1]
      %v205 = vlaneseq
      %v206 = vshrl.u32 %v205, 7
      %v207 = vsub.s32 0, %v206
      %v208 = vrot.slane %v203, %v207
      %v210 = vadd.f32 %v201, %v208
      %v211 = vadd.f32 %v202, %v208
      %v212 = vpack.c.bf16 %v211, %v210
      %v213 = vld [vmem:[%s5] sm:$0xf]
      %v214 = vld [vmem:[%s5 + $0x4] sm:$0xf]
      %v215 = vld [vmem:[%s5 + $0x8] sm:$0xf]
      %v216 = vld [vmem:[%s5 + $0xc] sm:$0xf]
      %v217 = vld [vmem:[%s6] sm:$0x1]
      %v219 = vlaneseq
      %v220 = vshrl.u32 %v219, 7
      %v221 = vsub.s32 0, %v220
      %v222 = vrot.slane %v217, %v221
      %v228 = vunpack.c.l.b16 %v213
      %v229 = vunpack.c.l.b16 %v214
      %v230 = vunpack.c.l.b16 %v215
      %v231 = vunpack.c.l.b16 %v216
      %v232 = vpack.c.b16 %v229, %v228
      %v233 = vpack.c.b16 %v231, %v230
      %v237 = vsel %vm79, %v212, 0
      %239 = vmatprep.subr.bf16.mxu0 0
      %240 = vmatpush1.bf16.msra.mxu0 %v232
      %241 = vmatprep.subr.bf16.mxu0 0
      %242 = vmatpush1.bf16.msra.mxu0 %v233
      %243 = vmatprep.subr.bf16.mxu0 0
      %244 = vmatpush1.bf16.msra.mxu0 0
      %245 = vmatprep.subr.bf16.mxu0 0
      %246 = vmatpush1.bf16.msra.mxu0 0
      %247 = vmatprep.subr.bf16.mxu0 0
      %248 = vmatpush1.bf16.msra.mxu0 0
      %249 = vmatprep.subr.bf16.mxu0 0
      %250 = vmatpush1.bf16.msra.mxu0 0
      %251 = vmatprep.subr.bf16.mxu0 0
      %252 = vmatpush1.bf16.msra.mxu0 0
      %253 = vmatprep.subr.bf16.mxu0 0
      %254 = vmatpush1.bf16.msra.mxu0 0
      %255 = vmatprep.subr.bf16.mxu0 0
      %256 = vmatpush1.bf16.msra.mxu0 0
      %257 = vmatprep.subr.bf16.mxu0 0
      %258 = vmatpush1.bf16.msra.mxu0 0
      %259 = vmatprep.subr.bf16.mxu0 0
      %260 = vmatpush1.bf16.msra.mxu0 0
      %261 = vmatprep.subr.bf16.mxu0 0
      %262 = vmatpush1.bf16.msra.mxu0 0
      %263 = vmatprep.subr.bf16.mxu0 0
      %264 = vmatpush1.bf16.msra.mxu0 0
      %265 = vmatprep.subr.bf16.mxu0 0
      %266 = vmatpush1.bf16.msra.mxu0 0
      %267 = vmatprep.subr.bf16.mxu0 0
      %268 = vmatpush1.bf16.msra.mxu0 0
      %269 = vmatprep.subr.bf16.mxu0 0
      %270 = vmatpush1.bf16.msra.mxu0 0
      %271 = vmatprep.mubr.bf16.mxu0 0
      %272 = vmatmul.mubr.bf16.gmra.mrb[0].mxu0 %v237
      %v273 = vpop.f32.mrb[0].mxu0
      %v274 = vadd.f32 %v222, %v273
      %v275 = vpop.f32.mrb[0].mxu0
      %v276 = vpop.f32.mrb[0].mxu0
      %v277 = vadd.f32 %v222, %v276
      %v278 = vpop.f32.mrb[0].mxu0
      %279 = vdwg.mxu0
      %280 = vst [vmem:[#allocation4] sm:$0xff] %v274
      %281 = vst [vmem:[#allocation4 + $0x8] sm:$0xff] %v277
      %v282 = vlaneseq
      %v283 = vand.u32 %v282, 127
      %vm284 = vcmp.lt.s32.totalorder %v283, 9
      %v285 = vsel %vm284, %v274, -1e+30
      %v286 = vsel %vm284, %v277, -1e+30
      %287 = vmax.xlane.f32.xlu0 %v285
      %v288 = vpop.xlane.xlu0 %287
      %289 = vmax.xlane.f32.xlu0 %v286
      %v290 = vpop.xlane.xlu0 %289
      %vm291 = vcmp.eq.f32.partialorder %v285, %v288
      %vm292 = vcmp.eq.f32.partialorder %v286, %v290
      %v293 = vcvt.s32.f32 %v283
      %v294 = vsel %vm291, %v293, 128.0
      %v295 = vsel %vm292, %v293, 128.0
      %296 = vmin.xlane.f32.xlu0 %v294
      %v297 = vpop.xlane.xlu0 %296
      %298 = vmin.xlane.f32.xlu0 %v295
      %v299 = vpop.xlane.xlu0 %298
      %v300 = vadd.f32 %v297, 1.0
      %v301 = vadd.f32 %v299, 1.0
      %v302 = vlaneseq
      %v303 = vshrl.u32 %v302, 7
      %vm304 = vcmp.le.s32.totalorder %v303, %v283
      %vm305 = vcmp.lt.s32.totalorder %v283, 8
      %vm306 = vmand %vm304, %vm305
      %v307 = vsel %vm306, 1, 0
      %v308 = vcvt.s32.f32 %v307
      %v309 = vpack.c.bf16 %v308, %v308
      %v310 = vpack.c.bf16 %v300, %v300
      %v311 = vpack.c.bf16 %v301, %v301
      %v314 = vunpack.c.l.b16 %v310
      %v315 = vunpack.c.l.b16 %v311
      %v316 = vlaneseq
      %v317 = vshrl.u32 %v316, 7
      %v318 = vsub.s32 %v283, %v317
      %v319 = vrot.slane %v314, %v318
      %v320 = vlaneseq
      %v321 = vshrl.u32 %v320, 7
      %v322 = vsub.s32 %v283, %v321
      %v323 = vrot.slane %v315, %v322
      %vm324 = vcmask 1041409
      %v325 = vsel %vm324, %v323, %v319
      %v326 = vpack.c.b16 %v325, %v325
      %vm327 = vcmask 64512
      %v329 = vsel %vm327, %v326, 0
      %vm331 = vcmask 1043456
      %v333 = vsel %vm331, %v309, 0
      %335 = vmatprep.subr.bf16.mxu0 0
      %336 = vmatpush1.bf16.msra.mxu0 %v333
      %337 = vmatprep.subr.bf16.mxu0 0
      %338 = vmatpush1.bf16.msra.mxu0 0
      %339 = vmatprep.subr.bf16.mxu0 0
      %340 = vmatpush1.bf16.msra.mxu0 0
      %341 = vmatprep.subr.bf16.mxu0 0
      %342 = vmatpush1.bf16.msra.mxu0 0
      %343 = vmatprep.subr.bf16.mxu0 0
      %344 = vmatpush1.bf16.msra.mxu0 0
      %345 = vmatprep.subr.bf16.mxu0 0
      %346 = vmatpush1.bf16.msra.mxu0 0
      %347 = vmatprep.subr.bf16.mxu0 0
      %348 = vmatpush1.bf16.msra.mxu0 0
      %349 = vmatprep.subr.bf16.mxu0 0
      %350 = vmatpush1.bf16.msra.mxu0 0
      %351 = vmatprep.subr.bf16.mxu0 0
      %352 = vmatpush1.bf16.msra.mxu0 0
      %353 = vmatprep.subr.bf16.mxu0 0
      %354 = vmatpush1.bf16.msra.mxu0 0
      %355 = vmatprep.subr.bf16.mxu0 0
      %356 = vmatpush1.bf16.msra.mxu0 0
      %357 = vmatprep.subr.bf16.mxu0 0
      %358 = vmatpush1.bf16.msra.mxu0 0
      %359 = vmatprep.subr.bf16.mxu0 0
      %360 = vmatpush1.bf16.msra.mxu0 0
      %361 = vmatprep.subr.bf16.mxu0 0
      %362 = vmatpush1.bf16.msra.mxu0 0
      %363 = vmatprep.subr.bf16.mxu0 0
      %364 = vmatpush1.bf16.msra.mxu0 0
      %365 = vmatprep.subr.bf16.mxu0 0
      %366 = vmatpush1.bf16.msra.mxu0 0
      %367 = vmatprep.mubr.bf16.mxu0 0
      %368 = vmatmul.mubr.bf16.gmra.mrb[0].mxu0 %v329
      %v369 = vpop.f32.mrb[0].mxu0
      %v370 = vadd.f32 0.0, %v369
      %v371 = vpop.f32.mrb[0].mxu0
      %v372 = vpop.f32.mrb[0].mxu0
      %v373 = vpop.f32.mrb[0].mxu0
      %374 = vdwg.mxu0
      %v377 = vlaneseq
      %v378 = vshrl.u32 %v377, 7
      %v379 = vsub.s32 %v283, %v378
      %v380 = vrot.slane %v300, %v379
      %v381 = vlaneseq
      %v382 = vshrl.u32 %v381, 7
      %v383 = vsub.s32 %v283, %v382
      %v384 = vrot.slane %v301, %v383
      %v385 = vsel %vm324, %v384, %v380
      %v387 = vsel %vm327, %v385, 0.0
      %388 = vst [vmem:[#allocation2] sm:$0x3] %v370
      %v389 = vsub.f32 %v370, %v387
      %390 = vst [vmem:[#allocation3] sm:$0x3] %v389
    $region33: #{length_class_duplication_forward.1} parent=1 // pred_fallthru
      _
    %v391 = vld [vmem:[#allocation2] sm:$0x3]
    %v394 = vunpack.c.l.s4 1966171168
    %v395 = vunpack.c.0.s8 %v394
    %v396 = vlaneseq
    %v397 = vshrl.u32 %v396, 7
    %v398 = vsub.s32 %v395, %v397
    %v399 = vrot.slane %v391, %v398
    %v400 = vcombine.high %v399, %v399
    %v402 = vunpack.c.l.s4 1966171168
    %v403 = vunpack.c.0.s8 %v402
    %v404 = vlaneseq
    %v405 = vshrl.u32 %v404, 7
    %v406 = vsub.s32 %v403, %v405
    %v407 = vrot.slane %v399, %v406
    %v409 = vunpack.c.l.s4 1966171168
    %v410 = vunpack.c.0.s8 %v409
    %v411 = vlaneseq
    %v412 = vshrl.u32 %v411, 7
    %v413 = vsub.s32 %v410, %v412
    %v414 = vrot.slane %v400, %v413
    %v415 = vld [vmem:[#allocation3] sm:$0x3]
    %v418 = vunpack.c.l.s4 1966171168
    %v419 = vunpack.c.0.s8 %v418
    %v420 = vlaneseq
    %v421 = vshrl.u32 %v420, 7
    %v422 = vsub.s32 %v419, %v421
    %v423 = vrot.slane %v415, %v422
    %v424 = vcombine.high %v423, %v423
    %v426 = vunpack.c.l.s4 1966171168
    %v427 = vunpack.c.0.s8 %v426
    %v428 = vlaneseq
    %v429 = vshrl.u32 %v428, 7
    %v430 = vsub.s32 %v427, %v429
    %v431 = vrot.slane %v423, %v430
    %v433 = vunpack.c.l.s4 1966171168
    %v434 = vunpack.c.0.s8 %v433
    %v435 = vlaneseq
    %v436 = vshrl.u32 %v435, 7
    %v437 = vsub.s32 %v434, %v436
    %v438 = vrot.slane %v424, %v437
    %v439 = vlaneseq
    %v440 = vshrl.u32 %v439, 7
    %v441 = vadd.s32 %v440, 8
    %v442 = vadd.s32 %v440, 16
    %s443 = smul.u32 0, 24
    %v444 = vstv %s443
    %v445 = vadd.s32 %v440, %v444
    %v446 = vadd.s32 %v441, %v444
    %v447 = vadd.s32 %v442, %v444
    %v448 = vcvt.s32.f32 %v445
    %v449 = vcvt.s32.f32 %v446
    %v450 = vcvt.s32.f32 %v447
    %v451 = vlaneseq
    %v452 = vshrl.u32 %v451, 7
    %v453 = vsub.s32 0, %v452
    %v454 = vrot.slane %v407, %v453
    %v455 = vlaneseq
    %v456 = vshrl.u32 %v455, 7
    %v457 = vsub.s32 0, %v456
    %v458 = vrot.slane %v414, %v457
    %vm461 = vcmp.lt.f32.partialorder %v448, %v454
    %vm462 = vcmp.lt.f32.partialorder %v449, %v454
    %vm463 = vcmp.lt.f32.partialorder %v450, %v454
    %vm464 = vcmp.lt.f32.partialorder %v448, %v458
    %vm465 = vcmp.lt.f32.partialorder %v449, %v458
    %vm466 = vcmp.lt.f32.partialorder %v450, %v458
    %v467 = vlaneseq
    %v468 = vshrl.u32 %v467, 7
    %v469 = vsub.s32 0, %v468
    %v470 = vrot.slane %v431, %v469
    %v471 = vlaneseq
    %v472 = vshrl.u32 %v471, 7
    %v473 = vsub.s32 0, %v472
    %v474 = vrot.slane %v438, %v473
    %vm477 = vcmp.ge.f32.partialorder %v448, %v470
    %vm478 = vcmp.ge.f32.partialorder %v449, %v470
    %vm479 = vcmp.ge.f32.partialorder %v450, %v470
    %vm480 = vcmp.ge.f32.partialorder %v448, %v474
    %vm481 = vcmp.ge.f32.partialorder %v449, %v474
    %vm482 = vcmp.ge.f32.partialorder %v450, %v474
    %vm483 = vmand %vm461, %vm477
    %vm484 = vmand %vm462, %vm478
    %vm485 = vmand %vm463, %vm479
    %vm486 = vmand %vm464, %vm480
    %vm487 = vmand %vm465, %vm481
    %vm488 = vmand %vm466, %vm482
    %v489 = vsel %vm483, 1, 0
    %v490 = vsel %vm484, 1, 0
    %v491 = vsel %vm485, 1, 0
    %v492 = vsel %vm486, 1, 0
    %v493 = vsel %vm487, 1, 0
    %v494 = vsel %vm488, 1, 0
    %v495 = vcvt.s32.f32 %v489
    %v496 = vcvt.s32.f32 %v490
    %v497 = vcvt.s32.f32 %v491
    %v498 = vcvt.s32.f32 %v492
    %v499 = vcvt.s32.f32 %v493
    %v500 = vcvt.s32.f32 %v494
    %v501 = vpack.c.bf16 %v496, %v495
    %v502 = vpack.c.bf16 %v497, %v497
    %v503 = vpack.c.bf16 %v499, %v498
    %v504 = vpack.c.bf16 %v500, %v500
    %v509 = vunpack.c.l.b16 %v501
    %v510 = vunpack.c.h.b16 %v501
    %v511 = vunpack.c.l.b16 %v502
    %v512 = vunpack.c.l.b16 %v503
    %v513 = vunpack.c.h.b16 %v503
    %v514 = vunpack.c.l.b16 %v504
    %v515 = vpack.c.b16 %v509, %v509
    %v516 = vpack.c.b16 %v510, %v510
    %v517 = vpack.c.b16 %v511, %v511
    %v518 = vpack.c.b16 %v512, %v512
    %v519 = vpack.c.b16 %v513, %v513
    %v520 = vpack.c.b16 %v514, %v514
    %527 = vst [vmem:[%s8] sm:$0xf] %v515
    %528 = vst [vmem:[%s8 + $0x4] sm:$0xf] %v516
    %529 = vst [vmem:[%s8 + $0x8] sm:$0xf] %v517
    %530 = vst [vmem:[%s8 + $0xc] sm:$0xf] %v518
    %531 = vst [vmem:[%s8 + $0x10] sm:$0xf] %v519
    %532 = vst [vmem:[%s8 + $0x14] sm:$0xf] %v520
    // Predicated region
    $region34: #{length_class_duplication_forward.1} parent=1 // pred_check
      _
    $region35: #{length_class_duplication_forward.1} parent=1 // pred_check_branch
      %534 = sbr.rel (0) target = $region37
    $region36: #{length_class_duplication_forward.1} parent=1 // pred_region
      %s536 = ssub.s32 256, 256
      %537 = vsyncadd [#allocation5], %s536
      %s538 = sshll.u32 [#allocation4], 4
      %s539 = int_to_ptr.vmem [resolvable:$true] %s538
      %544 = dma.vmem_to_hbm [thread:$0]  %s539, 256, %s7, [#allocation5], 128, 128, 8
    $region37: #{length_class_duplication_forward.1} parent=1 // pred_fallthru
      _
    // Predicated region
    $region38: #{length_class_duplication_forward.1} parent=1 // pred_check
      _
    $region39: #{length_class_duplication_forward.1} parent=1 // pred_check_branch
      %546 = sbr.rel (0) target = $region41
    $region40: #{length_class_duplication_forward.1} parent=1 // pred_region
      _
    $region41: #{length_class_duplication_forward.1} parent=1 // pred_fallthru
      _
    // Predicated region
    $region42: #{length_class_duplication_forward.1} parent=1 // pred_check
      _
    $region43: #{length_class_duplication_forward.1} parent=1 // pred_check_branch
      %548 = sbr.rel (0) target = $region45
    $region44: #{length_class_duplication_forward.1} parent=1 // pred_region
      %549 = dma.done [#allocation5], 256
    $region45: #{length_class_duplication_forward.1} parent=1 // pred_fallthru
      _
    // Predicated region
    $region46: #{length_class_duplication_forward.1} parent=1 // pred_check
      _
    $region47: #{length_class_duplication_forward.1} parent=1 // pred_check_branch
      %551 = sbr.rel (0) target = $region49
    $region48: #{length_class_duplication_forward.1} parent=1 // pred_region
      _
    $region49: #{length_class_duplication_forward.1} parent=1 // pred_fallthru
      _
    %552 = vsyncpa [#allocation5], 1

</llo_original>
